<compile_context>
chip_gen: v7x
topology: tpu7x:2x2x1
jax: 0.10.0
libtpu: 0.0.40
codegen_flags: <defaults>
</compile_context>

<pallas_src>
import jax
import jax.numpy as jnp
from jax.experimental import pallas as pl
from jax.experimental.pallas import tpu as pltpu

C_HID = 60             # hidden channels of layer1
_LANES = 128           # packed-channel width (2*60 taps + bias channel <= 128)
_MAX_ROW_TILE = 16384  # lane tile over flattened (n, t) rows (8 MiB f32 temp)


def _round_up(a, b):
    return -(-a // b) * b


def net_kernel(x3_ref, pa_ref, pb_ref, out_ref):
    """Fused Conv1d(1->60,k=2,p=1)+ReLU -> Conv1d(60->1,k=2)+ReLU.

    x3_ref : (3, R_TILE)   rows = [xp[t], xp[t+1], xp[t+2]] per output position
    pa_ref : (128, 4)      cols 0..2 = packed layer1 taps, col 3 = packed bias
    pb_ref : (8, 128)      row 0 = packed layer2 weights (+ bias channel)
    out_ref: (1, R_TILE)   final output row
    """
    x3 = x3_ref[...]                       # (3, R)
    w1 = pa_ref[:, 0:3]                    # (128, 3)
    b1 = pa_ref[:, 3:4]                    # (128, 1)
    w2 = pb_ref[...]                       # (8, 128), only row 0 is live

    # conv1 (both conv2 taps packed into 128 channels) on the MXU + bias + ReLU.
    h = jnp.dot(w1, x3, preferred_element_type=jnp.float32) + b1   # (128, R)
    h = jnp.maximum(h, 0.0)

    # conv2 channel reduction on the MXU (bias folded in via channel 127).
    y = jnp.dot(w2, h, preferred_element_type=jnp.float32)         # (8, R)
    out_ref[...] = jnp.maximum(y[0:1, :], 0.0)


def _pack_params(w1, b1, w2, b2):
    """Pack PyTorch Conv1d params into two small constant tiles."""
    w1 = jnp.asarray(w1, jnp.float32)[:, 0, :]   # (60, 2)
    b1 = jnp.asarray(b1, jnp.float32)            # (60,)
    w2 = jnp.asarray(w2, jnp.float32)[0]         # (60, 2)
    b2 = jnp.asarray(b2, jnp.float32)[0]         # scalar

    pa = jnp.zeros((_LANES, 4), jnp.float32)
    # packed channels 0..59  : hidden at position t   (uses xp[t], xp[t+1])
    pa = pa.at[0:C_HID, 0].set(w1[:, 0])
    pa = pa.at[0:C_HID, 1].set(w1[:, 1])
    pa = pa.at[0:C_HID, 3].set(b1)
    # packed channels 60..119: hidden at position t+1 (uses xp[t+1], xp[t+2])
    pa = pa.at[C_HID:2 * C_HID, 1].set(w1[:, 0])
    pa = pa.at[C_HID:2 * C_HID, 2].set(w1[:, 1])
    pa = pa.at[C_HID:2 * C_HID, 3].set(b1)
    # packed channel 127: constant-one channel (relu(1)=1) carrying b2.
    pa = pa.at[_LANES - 1, 3].set(1.0)

    pb = jnp.zeros((8, _LANES), jnp.float32)
    pb = pb.at[0, 0:C_HID].set(w2[:, 0])              # conv2 tap 0 weights
    pb = pb.at[0, C_HID:2 * C_HID].set(w2[:, 1])      # conv2 tap 1 weights
    pb = pb.at[0, _LANES - 1].set(b2)                 # conv2 bias via channel 127
    return pa, pb


def _pick_row_tile(rows):
    """Lane tile (multiple of 128); keep >=2 grid steps when possible (v7x)."""
    rows_round = _round_up(rows, _LANES)
    if rows_round >= 2 * _LANES:
        r_tile = min(_MAX_ROW_TILE, _round_up(rows_round // 2, _LANES))
    else:
        r_tile = rows_round
    return r_tile


def net_forward(x, w1, b1, w2, b2):
    """x: (N, 1, L) f32; params in PyTorch Conv1d layout. Returns (N, 1, L)."""
    x = jnp.asarray(x, jnp.float32)
    N, c_in, L = x.shape
    assert c_in == 1
    xs = x[:, 0, :]                                            # (N, L)

    # Three shifted taps of the zero-padded input (xp has one zero each side):
    #   tap j at output position t is xp[:, t + j].
    t0 = jnp.pad(xs[:, :L - 1], ((0, 0), (1, 0)))              # xp[:, t]
    t1 = xs                                                    # xp[:, t+1]
    t2 = jnp.pad(xs[:, 1:], ((0, 0), (0, 1)))                  # xp[:, t+2]

    rows = N * L
    r_tile = _pick_row_tile(rows)                              # multiple of 128
    rows_p = _round_up(rows, r_tile)

    # (3, N*L) tap matrix, n-major rows on the lane axis.  With
    # allow_input_fusion on this operand, XLA may fuse this producer into the
    # pallas_call instead of materializing it in HBM.
    x3 = jnp.stack([t0, t1, t2], axis=0).reshape(3, rows)
    x3 = jnp.pad(x3, ((0, 0), (0, rows_p - rows)))             # lane padding

    pa, pb = _pack_params(w1, b1, w2, b2)

    # Advisory cost: tiny MXU work, HBM-traffic dominated.
    flops = 2 * rows_p * (_LANES * 3 + 8 * _LANES)
    bytes_accessed = 4 * (3 * rows_p + rows_p + pa.size + pb.size)
    cost = pl.CostEstimate(flops=flops, transcendentals=0,
                           bytes_accessed=bytes_accessed)

    y = pl.pallas_call(
        net_kernel,
        out_shape=jax.ShapeDtypeStruct((1, rows_p), jnp.float32),
        grid=(rows_p // r_tile,),
        in_specs=[
            pl.BlockSpec((3, r_tile), lambda i: (0, i)),
            pl.BlockSpec((_LANES, 4), lambda i: (0, 0)),
            pl.BlockSpec((8, _LANES), lambda i: (0, 0)),
        ],
        out_specs=pl.BlockSpec((1, r_tile), lambda i: (0, i)),
        compiler_params=pltpu.CompilerParams(
            dimension_semantics=("parallel",),
            vmem_limit_bytes=32 * 1024 * 1024,
            # Allow XLA to fuse the pad/stack/reshape producer of x3 into the
            # call's first operand (per-input booleans).
            allow_input_fusion=[True, False, False],
        ),
        cost_estimate=cost,
    )(x3, pa, pb)

    return y[0, :rows].reshape(N, 1, L)


def net_forward_ref(x, w1, b1, w2, b2):
    """Pure-JAX reference reproducing the PyTorch forward (for validation)."""
    N, _, L = x.shape
    xp = jnp.pad(x[:, 0, :], ((0, 0), (1, 1)))                 # (N, L+2)
    L1 = L + 1
    h = (xp[:, None, 0:L1] * w1[None, :, 0, 0:1]
         + xp[:, None, 1:L1 + 1] * w1[None, :, 0, 1:2]
         + b1[None, :, None])
    h = jnp.maximum(h, 0.0)                                    # (N, 60, L+1)
    y = jnp.sum(h[:, :, 0:L] * w2[0, None, :, 0:1]
                + h[:, :, 1:L + 1] * w2[0, None, :, 1:2], axis=1) + b2[0]
    return jnp.maximum(y, 0.0)[:, None, :]                     # (N, 1, L)


if __name__ == "__main__":
    key = jax.random.PRNGKey(0)
    k_w1, k_b1, k_w2, k_b2, k_x, k_x2 = jax.random.split(key, 6)

    # Deterministic synthetic parameters (shapes follow nn.Conv1d in __init__).
    w1 = 0.1 * jax.random.normal(k_w1, (C_HID, 1, 2), dtype=jnp.float32)
    b1 = 0.1 * jax.random.normal(k_b1, (C_HID,), dtype=jnp.float32)
    w2 = 0.1 * jax.random.normal(k_w2, (1, C_HID, 2), dtype=jnp.float32)
    b2 = 0.1 * jax.random.normal(k_b2, (1,), dtype=jnp.float32)

    # Tolerance leaves headroom for default-precision MXU passes on f32.
    TOL = dict(atol=5e-3, rtol=5e-3)

    # Small input consistent with the module: batch=2, in_channels=1, length=16.
    x = jax.random.normal(k_x, (2, 1, 16), dtype=jnp.float32)
    out = jax.block_until_ready(net_forward(x, w1, b1, w2, b2))
    ref = jax.block_until_ready(net_forward_ref(x, w1, b1, w2, b2))
    assert out.shape == (2, 1, 16), out.shape
    assert jnp.allclose(out, ref, **TOL), "mismatch vs reference (small shape)"

    # Second shape exercising >=2 grid steps + row padding (still small).
    x2 = jax.random.normal(k_x2, (4, 1, 300), dtype=jnp.float32)
    out2 = jax.block_until_ready(net_forward(x2, w1, b1, w2, b2))
    ref2 = jax.block_until_ready(net_forward_ref(x2, w1, b1, w2, b2))
    assert out2.shape == (4, 1, 300), out2.shape
    assert jnp.allclose(out2, ref2, **TOL), "mismatch vs reference (tiled shape)"

    print("KERNEL_OK")
</pallas_src>

<mosaic_0001>
module attributes {stable_mosaic.version = 11 : i64} {
  func.func @net_kernel(%arg0: i32, %arg1: memref<3x128xf32, #tpu.memory_space<vmem>>, %arg2: memref<128x4xf32, #tpu.memory_space<vmem>>, %arg3: memref<8x128xf32, #tpu.memory_space<vmem>>, %arg4: memref<1x128xf32, #tpu.memory_space<vmem>>) attributes {dimension_semantics = [#tpu.dimension_semantics<parallel>], iteration_bounds = array<i64: 1>, scalar_prefetch = 0 : i64, scratch_operands = 0 : i64, tpu.core_type = #tpu.core_type<tc>, window_params = [{transform_indices = @transform_0, window_bounds = array<i64: 3, 128>}, {pipeline_mode = #tpu.pipeline_mode<synchronous>, transform_indices = @transform_1, window_bounds = array<i64: 128, 4>}, {pipeline_mode = #tpu.pipeline_mode<synchronous>, transform_indices = @transform_2, window_bounds = array<i64: 8, 128>}, {transform_indices = @transform_3, window_bounds = array<i64: 1, 128>}]} {
    %c0 = arith.constant 0 : index
    %c0_0 = arith.constant 0 : index
    %0 = vector.load %arg1[%c0, %c0_0] : memref<3x128xf32, #tpu.memory_space<vmem>>, vector<3x128xf32>
    %c0_1 = arith.constant 0 : index
    %c0_2 = arith.constant 0 : index
    %1 = vector.load %arg2[%c0_1, %c0_2] : memref<128x4xf32, #tpu.memory_space<vmem>>, vector<128x3xf32>
    %c0_3 = arith.constant 0 : index
    %c3 = arith.constant 3 : index
    %2 = vector.load %arg2[%c0_3, %c3] : memref<128x4xf32, #tpu.memory_space<vmem>>, vector<128x1xf32>
    %c0_4 = arith.constant 0 : index
    %c0_5 = arith.constant 0 : index
    %3 = vector.load %arg3[%c0_4, %c0_5] : memref<8x128xf32, #tpu.memory_space<vmem>>, vector<8x128xf32>
    %cst = arith.constant dense<0.000000e+00> : vector<128x128xf32>
    %4 = tpu.matmul %1, %0, %cst {dimension_numbers = #tpu.dot_dimension_numbers<[1], [0], [0], [1], [0, 0, 1, 1], [], []>} : vector<128x3xf32>, vector<3x128xf32>, vector<128x128xf32> -> vector<128x128xf32>
    %5 = vector.broadcast %2 : vector<128x1xf32> to vector<128x128xf32>
    %6 = arith.addf %4, %5 : vector<128x128xf32>
    %cst_6 = arith.constant 0.000000e+00 : f32
    %7 = vector.broadcast %cst_6 : f32 to vector<128x128xf32>
    %8 = arith.maximumf %6, %7 : vector<128x128xf32>
    %cst_7 = arith.constant dense<0.000000e+00> : vector<8x128xf32>
    %9 = tpu.matmul %3, %8, %cst_7 {dimension_numbers = #tpu.dot_dimension_numbers<[1], [0], [0], [1], [0, 0, 1, 1], [], []>} : vector<8x128xf32>, vector<128x128xf32>, vector<8x128xf32> -> vector<8x128xf32>
    %10 = vector.extract_strided_slice %9 {offsets = [0, 0], sizes = [1, 128], strides = [1, 1]} : vector<8x128xf32> to vector<1x128xf32>
    %cst_8 = arith.constant 0.000000e+00 : f32
    %11 = vector.broadcast %cst_8 : f32 to vector<1x128xf32>
    %12 = arith.maximumf %10, %11 : vector<1x128xf32>
    %c0_9 = arith.constant 0 : index
    %c0_10 = arith.constant 0 : index
    %13 = vector.load %arg4[%c0_9, %c0_10] : memref<1x128xf32, #tpu.memory_space<vmem>>, vector<1x128xf32>
    tpu.vector_store %arg4[%c0_9, %c0_10], %12 {strides = array<i32>} : memref<1x128xf32, #tpu.memory_space<vmem>>, vector<1x128xf32>,
    return
  }
  func.func @transform_0(%arg0: i32) -> (i32, i32) {
    %c0_i32 = arith.constant 0 : i32
    %c0_i32_0 = arith.constant 0 : i32
    return %c0_i32, %arg0 : i32, i32
  }
  func.func @transform_1(%arg0: i32) -> (i32, i32) {
    %c0_i32 = arith.constant 0 : i32
    %c0_i32_0 = arith.constant 0 : i32
    %c0_i32_1 = arith.constant 0 : i32
    return %c0_i32, %c0_i32_0 : i32, i32
  }
  func.func @transform_2(%arg0: i32) -> (i32, i32) {
    %c0_i32 = arith.constant 0 : i32
    %c0_i32_0 = arith.constant 0 : i32
    %c0_i32_1 = arith.constant 0 : i32
    return %c0_i32, %c0_i32_0 : i32, i32
  }
  func.func @transform_3(%arg0: i32) -> (i32, i32) {
    %c0_i32 = arith.constant 0 : i32
    %c0_i32_0 = arith.constant 0 : i32
    return %c0_i32, %arg0 : i32, i32
  }
}

</mosaic_0001>

<llo_original>
// kernel: tpu_custom_call.1
$region0: #{tpu_custom_call.1}
  #allocation0 [shape = 'u32[]', space=smem, size = 0x4, offset = 0x4, fixed_abs, tag = 'smem constant byte address 0x4 - core index']
  #allocation1 [shape = 'u32[144,128]{1,0:T(1,128)}', space=vmem, size = 0x12000, scoped, tag = 'internal scratch']
  %s0 = inlined_call_operand.vmem [shape: f32[3,128], index: 0, kind: input, shape index: {}]
  %s1 = inlined_call_operand.vmem [shape: f32[128,4], index: 1, kind: input, shape index: {}]
  %s2 = inlined_call_operand.vmem [shape: f32[8,128], index: 2, kind: input, shape index: {}]
  %s3 = inlined_call_operand.hbm [shape: f32[1,128], index: 3, kind: output, shape index: {}]
  %s4 = sld [smem:[#allocation0]]
  $region22: #{tpu_custom_call.1} parent=0
    _
  %s6 = ssub.s32 1, %s4
  %s7 = scalar_select 0, %s6, %s4
  $region1: #{tpu_custom_call.1} parent=0
    #allocation2 [shape = 'u8[512]{0}', space=vmem, size = 0x400, scoped, tag = 'output window, operand 0, single buffered']
    #allocation3 [shape = 's32[1]{0}', space=sflag, size = 0x4, scoped, tag = 'scoped memory for tpu_custom_call.1']
    %8 = vsyncpa [#allocation3], 0
    // Predicated region
    $region2: #{tpu_custom_call.1} parent=1 // pred_check
      _
    $region3: #{tpu_custom_call.1} parent=1 // pred_check_branch
      %10 = sbr.rel (0) target = $region5
    $region4: #{tpu_custom_call.1} parent=1 // pred_region
      _
    $region5: #{tpu_custom_call.1} parent=1 // pred_fallthru
      _
    // Predicated region
    $region6: #{tpu_custom_call.1} parent=1 // pred_check
      _
    $region7: #{tpu_custom_call.1} parent=1 // pred_check_branch
      %12 = sbr.rel (0) target = $region9
    $region8: #{tpu_custom_call.1} parent=1 // pred_region
      _
    $region9: #{tpu_custom_call.1} parent=1 // pred_fallthru
      _
    // Predicated region
    $region10: #{tpu_custom_call.1} parent=1 // pred_check
      _
    $region11: #{tpu_custom_call.1} parent=1 // pred_check_branch
      %14 = sbr.rel (0) target = $region13
    $region12: #{tpu_custom_call.1} parent=1 // pred_region
      _
    $region13: #{tpu_custom_call.1} parent=1 // pred_fallthru
      _
    %v15 = vld [vmem:[%s0] sm:$0x7]
    %v16 = vld [vmem:[%s1] sm:$0xff]
    %v17 = vld [vmem:[%s1 + $0x8] sm:$0xff]
    %v18 = vld [vmem:[%s1 + $0x10] sm:$0xff]
    %v19 = vld [vmem:[%s1 + $0x18] sm:$0xff]
    %v20 = vld [vmem:[%s1 + $0x20] sm:$0xff]
    %v21 = vld [vmem:[%s1 + $0x28] sm:$0xff]
    %v22 = vld [vmem:[%s1 + $0x30] sm:$0xff]
    %v23 = vld [vmem:[%s1 + $0x38] sm:$0xff]
    %v24 = vld [vmem:[%s1 + $0x40] sm:$0xff]
    %v25 = vld [vmem:[%s1 + $0x48] sm:$0xff]
    %v26 = vld [vmem:[%s1 + $0x50] sm:$0xff]
    %v27 = vld [vmem:[%s1 + $0x58] sm:$0xff]
    %v28 = vld [vmem:[%s1 + $0x60] sm:$0xff]
    %v29 = vld [vmem:[%s1 + $0x68] sm:$0xff]
    %v30 = vld [vmem:[%s1 + $0x70] sm:$0xff]
    %v31 = vld [vmem:[%s1 + $0x78] sm:$0xff]
    %v32 = vld [vmem:[%s2] sm:$0xff]
    %34 = vset.pattern.permute.xlu0 3
    %35 = vperm.xlu0 %34, %v16
    %v36 = vpop.permute.xlu0 %35
    %39 = vset.pattern.permute.xlu0 3
    %40 = vperm.xlu0 %39, %v17
    %v41 = vpop.permute.xlu0 %40
    %44 = vset.pattern.permute.xlu0 3
    %45 = vperm.xlu0 %44, %v18
    %v46 = vpop.permute.xlu0 %45
    %49 = vset.pattern.permute.xlu0 3
    %50 = vperm.xlu0 %49, %v19
    %v51 = vpop.permute.xlu0 %50
    %54 = vset.pattern.permute.xlu0 3
    %55 = vperm.xlu0 %54, %v20
    %v56 = vpop.permute.xlu0 %55
    %59 = vset.pattern.permute.xlu0 3
    %60 = vperm.xlu0 %59, %v21
    %v61 = vpop.permute.xlu0 %60
    %64 = vset.pattern.permute.xlu0 3
    %65 = vperm.xlu0 %64, %v22
    %v66 = vpop.permute.xlu0 %65
    %69 = vset.pattern.permute.xlu0 3
    %70 = vperm.xlu0 %69, %v23
    %v71 = vpop.permute.xlu0 %70
    %74 = vset.pattern.permute.xlu0 3
    %75 = vperm.xlu0 %74, %v24
    %v76 = vpop.permute.xlu0 %75
    %79 = vset.pattern.permute.xlu0 3
    %80 = vperm.xlu0 %79, %v25
    %v81 = vpop.permute.xlu0 %80
    %84 = vset.pattern.permute.xlu0 3
    %85 = vperm.xlu0 %84, %v26
    %v86 = vpop.permute.xlu0 %85
    %89 = vset.pattern.permute.xlu0 3
    %90 = vperm.xlu0 %89, %v27
    %v91 = vpop.permute.xlu0 %90
    %94 = vset.pattern.permute.xlu0 3
    %95 = vperm.xlu0 %94, %v28
    %v96 = vpop.permute.xlu0 %95
    %99 = vset.pattern.permute.xlu0 3
    %100 = vperm.xlu0 %99, %v29
    %v101 = vpop.permute.xlu0 %100
    %104 = vset.pattern.permute.xlu0 3
    %105 = vperm.xlu0 %104, %v30
    %v106 = vpop.permute.xlu0 %105
    %109 = vset.pattern.permute.xlu0 3
    %110 = vperm.xlu0 %109, %v31
    %v111 = vpop.permute.xlu0 %110
    %vm113 = vcmask 23552
    %v114 = vsel %vm113, %v16, 0
    %v116 = vsel %vm113, %v17, 0
    %v118 = vsel %vm113, %v18, 0
    %v120 = vsel %vm113, %v19, 0
    %v122 = vsel %vm113, %v20, 0
    %v124 = vsel %vm113, %v21, 0
    %v126 = vsel %vm113, %v22, 0
    %v128 = vsel %vm113, %v23, 0
    %v130 = vsel %vm113, %v24, 0
    %v132 = vsel %vm113, %v25, 0
    %v134 = vsel %vm113, %v26, 0
    %v136 = vsel %vm113, %v27, 0
    %v138 = vsel %vm113, %v28, 0
    %v140 = vsel %vm113, %v29, 0
    %v142 = vsel %vm113, %v30, 0
    %v144 = vsel %vm113, %v31, 0
    %vm146 = vcmask 1042432
    %v148 = vsel %vm146, %v15, 0
    %150 = vmatprep.subr.mxu0 0.0
    %151 = vmatpush1.msra.mxu0 %v148
    %152 = vmatprep.subr.mxu0 0.0
    %153 = vmatpush1.msra.mxu0 0.0
    %154 = vmatprep.subr.mxu0 0.0
    %155 = vmatpush1.msra.mxu0 0.0
    %156 = vmatprep.subr.mxu0 0.0
    %157 = vmatpush1.msra.mxu0 0.0
    %158 = vmatprep.subr.mxu0 0.0
    %159 = vmatpush1.msra.mxu0 0.0
    %160 = vmatprep.subr.mxu0 0.0
    %161 = vmatpush1.msra.mxu0 0.0
    %162 = vmatprep.subr.mxu0 0.0
    %163 = vmatpush1.msra.mxu0 0.0
    %164 = vmatprep.subr.mxu0 0.0
    %165 = vmatpush1.msra.mxu0 0.0
    %166 = vmatprep.subr.mxu0 0.0
    %167 = vmatpush1.msra.mxu0 0.0
    %168 = vmatprep.subr.mxu0 0.0
    %169 = vmatpush1.msra.mxu0 0.0
    %170 = vmatprep.subr.mxu0 0.0
    %171 = vmatpush1.msra.mxu0 0.0
    %172 = vmatprep.subr.mxu0 0.0
    %173 = vmatpush1.msra.mxu0 0.0
    %174 = vmatprep.subr.mxu0 0.0
    %175 = vmatpush1.msra.mxu0 0.0
    %176 = vmatprep.subr.mxu0 0.0
    %177 = vmatpush1.msra.mxu0 0.0
    %178 = vmatprep.subr.mxu0 0.0
    %179 = vmatpush1.msra.mxu0 0.0
    %180 = vmatprep.subr.mxu0 0.0
    %181 = vmatpush1.msra.mxu0 0.0
    %182 = vmatprep.subr.mxu0 0.0
    %183 = vmatpush1.msra.mxu0 0.0
    %184 = vmatprep.subr.mxu0 0.0
    %185 = vmatpush1.msra.mxu0 0.0
    %186 = vmatprep.subr.mxu0 0.0
    %187 = vmatpush1.msra.mxu0 0.0
    %188 = vmatprep.subr.mxu0 0.0
    %189 = vmatpush1.msra.mxu0 0.0
    %190 = vmatprep.subr.mxu0 0.0
    %191 = vmatpush1.msra.mxu0 0.0
    %192 = vmatprep.subr.mxu0 0.0
    %193 = vmatpush1.msra.mxu0 0.0
    %194 = vmatprep.subr.mxu0 0.0
    %195 = vmatpush1.msra.mxu0 0.0
    %196 = vmatprep.subr.mxu0 0.0
    %197 = vmatpush1.msra.mxu0 0.0
    %198 = vmatprep.subr.mxu0 0.0
    %199 = vmatpush1.msra.mxu0 0.0
    %200 = vmatprep.subr.mxu0 0.0
    %201 = vmatpush1.msra.mxu0 0.0
    %202 = vmatprep.subr.mxu0 0.0
    %203 = vmatpush1.msra.mxu0 0.0
    %204 = vmatprep.subr.mxu0 0.0
    %205 = vmatpush1.msra.mxu0 0.0
    %206 = vmatprep.subr.mxu0 0.0
    %207 = vmatpush1.msra.mxu0 0.0
    %208 = vmatprep.subr.mxu0 0.0
    %209 = vmatpush1.msra.mxu0 0.0
    %210 = vmatprep.subr.mxu0 0.0
    %211 = vmatpush1.msra.mxu0 0.0
    %212 = vmatprep.subr.mxu0 0.0
    %213 = vmatpush1.msra.mxu0 0.0
    %214 = vmatprep.mubr.f32.mxu0 0.0
    %215 = vmatmul.mubr.f32.gmra.mrb[0].mxu0 %v114
    %v216 = vpop.f32.mrb[0].mxu0
    %v217 = vadd.f32 %v36, %v216
    %v218 = vpop.f32.mrb[0].mxu0
    %219 = vmatprep.mubr.f32.mxu0 0.0
    %220 = vmatmul.mubr.f32.gmra.mrb[0].mxu0 %v116
    %v221 = vpop.f32.mrb[0].mxu0
    %v222 = vadd.f32 %v41, %v221
    %v223 = vpop.f32.mrb[0].mxu0
    %224 = vmatprep.mubr.f32.mxu0 0.0
    %225 = vmatmul.mubr.f32.gmra.mrb[0].mxu0 %v118
    %v226 = vpop.f32.mrb[0].mxu0
    %v227 = vadd.f32 %v46, %v226
    %v228 = vpop.f32.mrb[0].mxu0
    %229 = vmatprep.mubr.f32.mxu0 0.0
    %230 = vmatmul.mubr.f32.gmra.mrb[0].mxu0 %v120
    %v231 = vpop.f32.mrb[0].mxu0
    %v232 = vadd.f32 %v51, %v231
    %v233 = vpop.f32.mrb[0].mxu0
    %234 = vmatprep.mubr.f32.mxu0 0.0
    %235 = vmatmul.mubr.f32.gmra.mrb[0].mxu0 %v122
    %v236 = vpop.f32.mrb[0].mxu0
    %v237 = vadd.f32 %v56, %v236
    %v238 = vpop.f32.mrb[0].mxu0
    %239 = vmatprep.mubr.f32.mxu0 0.0
    %240 = vmatmul.mubr.f32.gmra.mrb[0].mxu0 %v124
    %v241 = vpop.f32.mrb[0].mxu0
    %v242 = vadd.f32 %v61, %v241
    %v243 = vpop.f32.mrb[0].mxu0
    %244 = vmatprep.mubr.f32.mxu0 0.0
    %245 = vmatmul.mubr.f32.gmra.mrb[0].mxu0 %v126
    %v246 = vpop.f32.mrb[0].mxu0
    %v247 = vadd.f32 %v66, %v246
    %v248 = vpop.f32.mrb[0].mxu0
    %249 = vmatprep.mubr.f32.mxu0 0.0
    %250 = vmatmul.mubr.f32.gmra.mrb[0].mxu0 %v128
    %v251 = vpop.f32.mrb[0].mxu0
    %v252 = vadd.f32 %v71, %v251
    %v253 = vpop.f32.mrb[0].mxu0
    %254 = vmatprep.mubr.f32.mxu0 0.0
    %255 = vmatmul.mubr.f32.gmra.mrb[0].mxu0 %v130
    %v256 = vpop.f32.mrb[0].mxu0
    %v257 = vadd.f32 %v76, %v256
    %v258 = vpop.f32.mrb[0].mxu0
    %259 = vmatprep.mubr.f32.mxu0 0.0
    %260 = vmatmul.mubr.f32.gmra.mrb[0].mxu0 %v132
    %v261 = vpop.f32.mrb[0].mxu0
    %v262 = vadd.f32 %v81, %v261
    %v263 = vpop.f32.mrb[0].mxu0
    %264 = vmatprep.mubr.f32.mxu0 0.0
    %265 = vmatmul.mubr.f32.gmra.mrb[0].mxu0 %v134
    %v266 = vpop.f32.mrb[0].mxu0
    %v267 = vadd.f32 %v86, %v266
    %v268 = vpop.f32.mrb[0].mxu0
    %269 = vmatprep.mubr.f32.mxu0 0.0
    %270 = vmatmul.mubr.f32.gmra.mrb[0].mxu0 %v136
    %v271 = vpop.f32.mrb[0].mxu0
    %v272 = vadd.f32 %v91, %v271
    %v273 = vpop.f32.mrb[0].mxu0
    %274 = vmatprep.mubr.f32.mxu0 0.0
    %275 = vmatmul.mubr.f32.gmra.mrb[0].mxu0 %v138
    %v276 = vpop.f32.mrb[0].mxu0
    %v277 = vadd.f32 %v96, %v276
    %v278 = vpop.f32.mrb[0].mxu0
    %279 = vmatprep.mubr.f32.mxu0 0.0
    %280 = vmatmul.mubr.f32.gmra.mrb[0].mxu0 %v140
    %v281 = vpop.f32.mrb[0].mxu0
    %v282 = vadd.f32 %v101, %v281
    %v283 = vpop.f32.mrb[0].mxu0
    %284 = vmatprep.mubr.f32.mxu0 0.0
    %285 = vmatmul.mubr.f32.gmra.mrb[0].mxu0 %v142
    %v286 = vpop.f32.mrb[0].mxu0
    %v287 = vadd.f32 %v106, %v286
    %v288 = vpop.f32.mrb[0].mxu0
    %289 = vmatprep.mubr.f32.mxu0 0.0
    %290 = vmatmul.mubr.f32.gmra.mrb[0].mxu0 %v144
    %v291 = vpop.f32.mrb[0].mxu0
    %v292 = vadd.f32 %v111, %v291
    %v293 = vpop.f32.mrb[0].mxu0
    %294 = vdwg.mxu0
    %v295 = vmax.f32 %v217, 0.0
    %v296 = vmax.f32 %v222, 0.0
    %v297 = vmax.f32 %v227, 0.0
    %v298 = vmax.f32 %v232, 0.0
    %v299 = vmax.f32 %v237, 0.0
    %v300 = vmax.f32 %v242, 0.0
    %v301 = vmax.f32 %v247, 0.0
    %v302 = vmax.f32 %v252, 0.0
    %v303 = vmax.f32 %v257, 0.0
    %v304 = vmax.f32 %v262, 0.0
    %v305 = vmax.f32 %v267, 0.0
    %v306 = vmax.f32 %v272, 0.0
    %v307 = vmax.f32 %v277, 0.0
    %v308 = vmax.f32 %v282, 0.0
    %v309 = vmax.f32 %v287, 0.0
    %v310 = vmax.f32 %v292, 0.0
    %311 = vmatprep.subr.mxu0 0.0
    %312 = vmatpush1.msra.mxu0 %v295
    %313 = vmatprep.subr.mxu0 0.0
    %314 = vmatpush1.msra.mxu0 %v296
    %315 = vmatprep.subr.mxu0 0.0
    %316 = vmatpush1.msra.mxu0 %v297
    %317 = vmatprep.subr.mxu0 0.0
    %318 = vmatpush1.msra.mxu0 %v298
    %319 = vmatprep.subr.mxu0 0.0
    %320 = vmatpush1.msra.mxu0 %v299
    %321 = vmatprep.subr.mxu0 0.0
    %322 = vmatpush1.msra.mxu0 %v300
    %323 = vmatprep.subr.mxu0 0.0
    %324 = vmatpush1.msra.mxu0 %v301
    %325 = vmatprep.subr.mxu0 0.0
    %326 = vmatpush1.msra.mxu0 %v302
    %327 = vmatprep.subr.mxu0 0.0
    %328 = vmatpush1.msra.mxu0 %v303
    %329 = vmatprep.subr.mxu0 0.0
    %330 = vmatpush1.msra.mxu0 %v304
    %331 = vmatprep.subr.mxu0 0.0
    %332 = vmatpush1.msra.mxu0 %v305
    %333 = vmatprep.subr.mxu0 0.0
    %334 = vmatpush1.msra.mxu0 %v306
    %335 = vmatprep.subr.mxu0 0.0
    %336 = vmatpush1.msra.mxu0 %v307
    %337 = vmatprep.subr.mxu0 0.0
    %338 = vmatpush1.msra.mxu0 %v308
    %339 = vmatprep.subr.mxu0 0.0
    %340 = vmatpush1.msra.mxu0 %v309
    %341 = vmatprep.subr.mxu0 0.0
    %342 = vmatpush1.msra.mxu0 %v310
    %343 = vmatprep.subr.mxu0 0.0
    %344 = vmatpush1.msra.mxu0 0.0
    %345 = vmatprep.subr.mxu0 0.0
    %346 = vmatpush1.msra.mxu0 0.0
    %347 = vmatprep.subr.mxu0 0.0
    %348 = vmatpush1.msra.mxu0 0.0
    %349 = vmatprep.subr.mxu0 0.0
    %350 = vmatpush1.msra.mxu0 0.0
    %351 = vmatprep.subr.mxu0 0.0
    %352 = vmatpush1.msra.mxu0 0.0
    %353 = vmatprep.subr.mxu0 0.0
    %354 = vmatpush1.msra.mxu0 0.0
    %355 = vmatprep.subr.mxu0 0.0
    %356 = vmatpush1.msra.mxu0 0.0
    %357 = vmatprep.subr.mxu0 0.0
    %358 = vmatpush1.msra.mxu0 0.0
    %359 = vmatprep.subr.mxu0 0.0
    %360 = vmatpush1.msra.mxu0 0.0
    %361 = vmatprep.subr.mxu0 0.0
    %362 = vmatpush1.msra.mxu0 0.0
    %363 = vmatprep.subr.mxu0 0.0
    %364 = vmatpush1.msra.mxu0 0.0
    %365 = vmatprep.subr.mxu0 0.0
    %366 = vmatpush1.msra.mxu0 0.0
    %367 = vmatprep.subr.mxu0 0.0
    %368 = vmatpush1.msra.mxu0 0.0
    %369 = vmatprep.subr.mxu0 0.0
    %370 = vmatpush1.msra.mxu0 0.0
    %371 = vmatprep.subr.mxu0 0.0
    %372 = vmatpush1.msra.mxu0 0.0
    %373 = vmatprep.subr.mxu0 0.0
    %374 = vmatpush1.msra.mxu0 0.0
    %375 = vmatprep.mubr.f32.mxu0 0.0
    %376 = vmatmul.mubr.f32.gmra.mrb[0].mxu0 %v32
    %v377 = vpop.f32.mrb[0].mxu0
    %v378 = vadd.f32 0.0, %v377
    %v379 = vpop.f32.mrb[0].mxu0
    %380 = vdwg.mxu0
    %v381 = vmax.f32 %v378, 0.0
    %382 = vst [vmem:[#allocation2] sm:$0x1] %v381
    // Predicated region
    $region14: #{tpu_custom_call.1} parent=1 // pred_check
      _
    $region15: #{tpu_custom_call.1} parent=1 // pred_check_branch
      %384 = sbr.rel (0) target = $region17
    $region16: #{tpu_custom_call.1} parent=1 // pred_region
      %s386 = ssub.s32 16, 16
      %387 = vsyncadd [#allocation3], %s386
      %s389 = sshll.u32 [#allocation2], 4
      %s390 = int_to_ptr.vmem [resolvable:$true] %s389
      %392 = dma.vmem_to_hbm [thread:$0]  %s390, 16, %s3, [#allocation3]
    $region17: #{tpu_custom_call.1} parent=1 // pred_fallthru
      _
    // Predicated region
    $region18: #{tpu_custom_call.1} parent=1 // pred_check
      _
    $region19: #{tpu_custom_call.1} parent=1 // pred_check_branch
      %394 = sbr.rel (0) target = $region21
    $region20: #{tpu_custom_call.1} parent=1 // pred_region
      %395 = dma.done [#allocation3], 16
    $region21: #{tpu_custom_call.1} parent=1 // pred_fallthru
      _
    %396 = vsyncpa [#allocation3], 1

</llo_original>
